<compile_context>
chip_gen: v6e
topology: v6e:2x2x1
jax: 0.10.0
libtpu: 0.0.40
codegen_flags: <defaults>
</compile_context>

<pallas_src>
import functools

import jax
import jax.numpy as jnp
from jax.experimental import pallas as pl
from jax.experimental.pallas import tpu as pltpu

_LANE = 128


def _drop_path_kernel(x_ref, s_ref, o_ref):
    # x_ref: (tb, tn) tile of the flattened (rows, cols) input
    # s_ref: (tb, 1) per-row keep / keep_prob scale factors (f32)
    x = x_ref[...]
    if jnp.issubdtype(x_ref.dtype, jnp.floating):
        # Native-dtype multiply: halves vreg pressure for bf16 on v6e/v7x,
        # bit-identical to the f32 path for f32 inputs.
        o_ref[...] = x * s_ref[...].astype(x_ref.dtype)
    else:
        o_ref[...] = (x.astype(jnp.float32) * s_ref[...]).astype(o_ref.dtype)


def _sublane_pack(itemsize):
    # Rows per packed sublane: 8 for f32, 16 for bf16/f16, 32 for int8/fp8.
    return 8 * max(1, 4 // itemsize)


@functools.lru_cache(maxsize=None)
def _vmem_plan():
    """(per-block byte budget, vmem_limit_bytes) chosen per chip generation."""
    try:
        info = pltpu.get_tpu_info()
        cap = int(getattr(info, "vmem_capacity_bytes", 0) or 0)
    except Exception:  # detection failed -> conservative plan (fits everywhere)
        cap = 0
    if cap >= 96 * 1024 * 1024:            # v5e / v6e: 128 MiB physical VMEM
        return 8 * 1024 * 1024, 64 * 1024 * 1024
    return 6 * 1024 * 1024, 32 * 1024 * 1024   # v7x (64 MiB/TC) or unknown


def _choose_row_split(B, M, itemsize):
    """Pick S (power of two dividing M) so rows = B*S fills the sublane packing
    while columns M/S stay lane-wide (>=128)."""
    pack = _sublane_pack(itemsize)
    if B >= pack:
        return 1
    s = 1
    while (M % (s * 2) == 0) and (M // (s * 2) >= _LANE) and (B * s * 2 <= 256):
        s *= 2
    return s


def _choose_tiles(B, M, itemsize, block_budget):
    """Pick (tb, tn, grid): ~block_budget bytes per block, lane-dense, and enough
    blocks along a parallel axis for v7x's two TensorCores."""
    pack = _sublane_pack(itemsize)

    # Batch (sublane) tile: full batch when small (block dim == array dim is always
    # legal); otherwise round so every block, including the ragged last one, is a
    # multiple of the packing factor (no masked partial-sublane stores).
    if B <= 256:
        tb = B
    else:
        n_b = pl.cdiv(B, 256)
        tb = pack * pl.cdiv(B, pack * n_b)

    # Feature (lane) tile: multiple of 128, sized to the per-block byte budget.
    max_tn = max(_LANE, (block_budget // (tb * itemsize)) // _LANE * _LANE)
    tn = M if M <= max_tn else max_tn

    # Guarantee multiple parallel blocks on non-tiny inputs so both v7x TCs work.
    total_bytes = B * M * itemsize
    if total_bytes >= 2 * block_budget:
        min_blocks = 4
    elif total_bytes >= block_budget // 2:
        min_blocks = 2
    else:
        min_blocks = 1
    n_blocks = pl.cdiv(B, tb) * pl.cdiv(M, tn)
    if n_blocks < min_blocks and M > _LANE:
        want_n = pl.cdiv(min_blocks, pl.cdiv(B, tb))
        tn_new = max(_LANE, pl.cdiv(pl.cdiv(M, want_n), _LANE) * _LANE)
        if tn_new < tn:
            tn = tn_new

    grid = (pl.cdiv(B, tb), pl.cdiv(M, tn))
    return tb, tn, grid


def _drop_path_scale_rows(x2d, scale_col):
    """x2d * scale_col (broadcast over the last dim) via a Pallas kernel."""
    B, M = x2d.shape
    itemsize = jnp.dtype(x2d.dtype).itemsize
    block_budget, vmem_limit = _vmem_plan()
    tb, tn, grid = _choose_tiles(B, M, itemsize, block_budget)
    return pl.pallas_call(
        _drop_path_kernel,
        out_shape=jax.ShapeDtypeStruct((B, M), x2d.dtype),
        grid=grid,
        in_specs=[
            pl.BlockSpec((tb, tn), lambda i, j: (i, j)),
            pl.BlockSpec((tb, 1), lambda i, j: (i, 0)),
        ],
        out_specs=pl.BlockSpec((tb, tn), lambda i, j: (i, j)),
        compiler_params=pltpu.CompilerParams(
            dimension_semantics=("parallel", "parallel"),
            vmem_limit_bytes=vmem_limit,
        ),
    )(x2d, scale_col)


def drop_path(x, drop_prob=0.0, training=False, scale_by_keep=True, *, key=None):
    """Functional DropPath mirroring the PyTorch module's forward."""
    if drop_prob == 0.0 or not training:
        return x
    if key is None:
        raise ValueError("A PRNG key is required when training with drop_prob > 0.")
    if x.size == 0:
        return x
    keep_prob = 1.0 - drop_prob
    B = x.shape[0]
    # Per-sample keep mask (tiny, O(B)) — torch's in-place bernoulli_ equivalent.
    keep = jax.random.bernoulli(key, keep_prob, (B,)).astype(jnp.float32)
    scale = keep / keep_prob if (keep_prob > 0.0 and scale_by_keep) else keep

    M = 1
    for d in x.shape[1:]:
        M *= d
    itemsize = jnp.dtype(x.dtype).itemsize

    # Sublane-density fix for small B / packed dtypes: view each sample as S rows.
    S = _choose_row_split(B, M, itemsize)
    x2d = x.reshape(B * S, M // S)
    if S > 1:
        scale_col = jnp.repeat(scale, S).reshape(B * S, 1)
    else:
        scale_col = scale.reshape(B, 1)

    y2d = _drop_path_scale_rows(x2d, scale_col)
    return y2d.reshape(x.shape)


class DropPath:
    """Stateless stand-in for the nn.Module wrapper."""

    def __init__(self, drop_prob: float = 0.0, scale_by_keep: bool = True):
        self.drop_prob = drop_prob
        self.scale_by_keep = scale_by_keep

    def __call__(self, x, *, training=False, key=None):
        return drop_path(x, self.drop_prob, training, self.scale_by_keep, key=key)


def _reference(x, drop_prob, training, scale_by_keep, key):
    if drop_prob == 0.0 or not training:
        return x
    keep_prob = 1.0 - drop_prob
    B = x.shape[0]
    keep = jax.random.bernoulli(key, keep_prob, (B,)).astype(jnp.float32)
    scale = keep / keep_prob if (keep_prob > 0.0 and scale_by_keep) else keep
    bshape = (B,) + (1,) * (x.ndim - 1)
    if jnp.issubdtype(x.dtype, jnp.floating):
        return x * scale.reshape(bshape).astype(x.dtype)
    return (x.astype(jnp.float32) * scale.reshape(bshape)).astype(x.dtype)


if __name__ == "__main__":
    key = jax.random.PRNGKey(0)
    k_x1, k_x2, k_x3, k_x4, k_m1, k_m2, k_m3, k_m4 = jax.random.split(key, 8)

    drop_prob = 0.25
    module = DropPath(drop_prob=drop_prob, scale_by_keep=True)

    # Case 1: typical 4-D input (B, C, H, W) = (2, 4, 16, 16); small-B row split.
    x1 = jax.random.normal(k_x1, (2, 4, 16, 16), jnp.float32)
    y1 = jax.block_until_ready(module(x1, training=True, key=k_m1))
    r1 = _reference(x1, drop_prob, True, True, k_m1)
    assert y1.shape == x1.shape and y1.dtype == x1.dtype
    assert jnp.allclose(y1, r1, atol=1e-6, rtol=1e-6)

    # Case 2: 3-D input with an awkward feature size (M = 8*37 = 296).
    x2 = jax.random.normal(k_x2, (2, 8, 37), jnp.float32)
    y2 = jax.block_until_ready(module(x2, training=True, key=k_m2))
    r2 = _reference(x2, drop_prob, True, True, k_m2)
    assert jnp.allclose(y2, r2, atol=1e-6, rtol=1e-6)

    # Case 3: larger input that exercises the multi-block (megacore) grid path.
    x3 = jax.random.normal(k_x3, (8, 3, 224, 224), jnp.float32)
    y3 = jax.block_until_ready(module(x3, training=True, key=k_m3))
    r3 = _reference(x3, drop_prob, True, True, k_m3)
    assert jnp.allclose(y3, r3, atol=1e-6, rtol=1e-6)

    # Case 4: bf16 input exercises the native-dtype multiply + packed row split.
    x4 = jax.random.normal(k_x4, (4, 8, 384), jnp.float32).astype(jnp.bfloat16)
    y4 = jax.block_until_ready(module(x4, training=True, key=k_m4))
    r4 = _reference(x4, drop_prob, True, True, k_m4)
    assert y4.dtype == jnp.bfloat16
    assert jnp.allclose(y4.astype(jnp.float32), r4.astype(jnp.float32),
                        atol=1e-2, rtol=1e-2)

    # Case 5: eval path and drop_prob == 0 path are exact identity (no kernel).
    y_eval = module(x1, training=False, key=k_m1)
    assert bool(jnp.all(y_eval == x1))
    y_p0 = drop_path(x1, 0.0, True, True, key=k_m1)
    assert bool(jnp.all(y_p0 == x1))

    # Sanity: scale_by_keep=False keeps surviving samples unscaled.
    y_ns = jax.block_until_ready(drop_path(x1, drop_prob, True, False, key=k_m1))
    r_ns = _reference(x1, drop_prob, True, False, k_m1)
    assert jnp.allclose(y_ns, r_ns, atol=1e-6, rtol=1e-6)

    print("KERNEL_OK")
</pallas_src>

<mosaic_0001>
module attributes {stable_mosaic.version = 11 : i64} {
  func.func @_drop_path_kernel(%arg0: i32, %arg1: i32, %arg2: memref<16x128xf32, #tpu.memory_space<vmem>>, %arg3: memref<16x1xf32, #tpu.memory_space<vmem>>, %arg4: memref<16x128xf32, #tpu.memory_space<vmem>>) attributes {dimension_semantics = [#tpu.dimension_semantics<parallel>, #tpu.dimension_semantics<parallel>], iteration_bounds = array<i64: 1, 1>, scalar_prefetch = 0 : i64, scratch_operands = 0 : i64, tpu.core_type = #tpu.core_type<tc>, window_params = [{transform_indices = @transform_0, window_bounds = array<i64: 16, 128>}, {transform_indices = @transform_1, window_bounds = array<i64: 16, 1>}, {transform_indices = @transform_2, window_bounds = array<i64: 16, 128>}]} {
    %c0 = arith.constant 0 : index
    %c0_0 = arith.constant 0 : index
    %0 = vector.load %arg2[%c0, %c0_0] : memref<16x128xf32, #tpu.memory_space<vmem>>, vector<16x128xf32>
    %c0_1 = arith.constant 0 : index
    %c0_2 = arith.constant 0 : index
    %1 = vector.load %arg3[%c0_1, %c0_2] : memref<16x1xf32, #tpu.memory_space<vmem>>, vector<16x1xf32>
    %2 = vector.broadcast %1 : vector<16x1xf32> to vector<16x128xf32>
    %3 = arith.mulf %0, %2 : vector<16x128xf32>
    %c0_3 = arith.constant 0 : index
    %c0_4 = arith.constant 0 : index
    %4 = vector.load %arg4[%c0_3, %c0_4] : memref<16x128xf32, #tpu.memory_space<vmem>>, vector<16x128xf32>
    tpu.vector_store %arg4[%c0_3, %c0_4], %3 {strides = array<i32>} : memref<16x128xf32, #tpu.memory_space<vmem>>, vector<16x128xf32>,
    return
  }
  func.func @transform_0(%arg0: i32, %arg1: i32) -> (i32, i32) {
    %c0_i32 = arith.constant 0 : i32
    return %arg0, %arg1 : i32, i32
  }
  func.func @transform_1(%arg0: i32, %arg1: i32) -> (i32, i32) {
    %c0_i32 = arith.constant 0 : i32
    %c0_i32_0 = arith.constant 0 : i32
    return %arg0, %c0_i32 : i32, i32
  }
  func.func @transform_2(%arg0: i32, %arg1: i32) -> (i32, i32) {
    %c0_i32 = arith.constant 0 : i32
    return %arg0, %arg1 : i32, i32
  }
}

</mosaic_0001>

<llo_original>
// kernel: tpu_custom_call.1
$region0: #{tpu_custom_call.1}
  #allocation0 [shape = 'u32[]', space=smem, size = 0x4, offset = 0x4, fixed_abs, tag = 'smem constant byte address 0x4 - core index']
  #allocation1 [shape = 'u32[144,128]{1,0:T(1,128)}', space=vmem, size = 0x12000, scoped, tag = 'internal scratch']
  %s0 = inlined_call_operand.vmem [shape: f32[16,128], index: 0, kind: input, shape index: {}]
  %s1 = inlined_call_operand.vmem [shape: f32[16,1], index: 1, kind: input, shape index: {}]
  %s2 = inlined_call_operand.hbm [shape: f32[16,128], index: 2, kind: output, shape index: {}]
  %s3 = sld [smem:[#allocation0]]
  $region18: #{tpu_custom_call.1} parent=0
    _
  %s5 = ssub.s32 1, %s3
  %s6 = scalar_select 0, %s5, %s3
  $region1: #{tpu_custom_call.1} parent=0
    #allocation2 [shape = 'u8[8192]{0}', space=vmem, size = 0x2000, scoped, tag = 'output window, operand 0, single buffered']
    #allocation3 [shape = 's32[1]{0}', space=sflag, size = 0x4, scoped, tag = 'scoped memory for tpu_custom_call.1']
    %7 = vsyncpa [#allocation3], 0
    // Predicated region
    $region2: #{tpu_custom_call.1} parent=1 // pred_check
      _
    $region3: #{tpu_custom_call.1} parent=1 // pred_check_branch
      %9 = sbr.rel (0) target = $region5
    $region4: #{tpu_custom_call.1} parent=1 // pred_region
      _
    $region5: #{tpu_custom_call.1} parent=1 // pred_fallthru
      _
    // Predicated region
    $region6: #{tpu_custom_call.1} parent=1 // pred_check
      _
    $region7: #{tpu_custom_call.1} parent=1 // pred_check_branch
      %11 = sbr.rel (0) target = $region9
    $region8: #{tpu_custom_call.1} parent=1 // pred_region
      _
    $region9: #{tpu_custom_call.1} parent=1 // pred_fallthru
      _
    %v12 = vld [vmem:[%s0] sm:$0xff]
    %v13 = vld [vmem:[%s0 + $0x8] sm:$0xff]
    %v14 = vld [vmem:[%s1] sm:$0xff]
    %v15 = vld [vmem:[%s1 + $0x8] sm:$0xff]
    %17 = vset.pattern.permute.xlu0 0
    %18 = vperm.xlu0 %17, %v14
    %v19 = vpop.permute.xlu0 %18
    %22 = vset.pattern.permute.xlu0 0
    %23 = vperm.xlu0 %22, %v15
    %v24 = vpop.permute.xlu0 %23
    %v26 = vmul.f32 %v12, %v19
    %v27 = vmul.f32 %v13, %v24
    %28 = vst [vmem:[#allocation2] sm:$0xff] %v26
    %29 = vst [vmem:[#allocation2 + $0x8] sm:$0xff] %v27
    // Predicated region
    $region10: #{tpu_custom_call.1} parent=1 // pred_check
      _
    $region11: #{tpu_custom_call.1} parent=1 // pred_check_branch
      %31 = sbr.rel (0) target = $region13
    $region12: #{tpu_custom_call.1} parent=1 // pred_region
      %s33 = ssub.s32 256, 256
      %34 = vsyncadd [#allocation3], %s33
      %s35 = sshll.u32 [#allocation2], 4
      %s36 = int_to_ptr.vmem [resolvable:$true] %s35
      %41 = dma.vmem_to_hbm [thread:$0]  %s36, 256, %s2, [#allocation3], 128, 128, 8
    $region13: #{tpu_custom_call.1} parent=1 // pred_fallthru
      _
    // Predicated region
    $region14: #{tpu_custom_call.1} parent=1 // pred_check
      _
    $region15: #{tpu_custom_call.1} parent=1 // pred_check_branch
      %43 = sbr.rel (0) target = $region17
    $region16: #{tpu_custom_call.1} parent=1 // pred_region
      %44 = dma.done [#allocation3], 256
    $region17: #{tpu_custom_call.1} parent=1 // pred_fallthru
      _
    %45 = vsyncpa [#allocation3], 1

</llo_original>
